<compile_context>
chip_gen: v7x
topology: tpu7x:2x2x1
jax: 0.10.0
libtpu: 0.0.40
codegen_flags: <defaults>
</compile_context>

<pallas_src>
import functools

import jax
import jax.numpy as jnp
from jax.experimental import pallas as pl
from jax.experimental.pallas import tpu as pltpu

LANE = 128      # TPU lane width; hidden/output dims padded to this.
SUBLANE = 8     # sublane multiple for the second-to-last dim.


def _round_up(x, m):
    return ((x + m - 1) // m) * m


def mlp_kernel(x_ref, w0_ref, wh_ref, b_ref, o_ref):
    """x_ref : (TILE_B, in_pad)   compute dtype (narrow, native feature width)
       w0_ref: (in_pad, 128)      compute dtype (layer-0 weight, lane-dense)
       wh_ref: (L-1, 128, 128)    compute dtype (layers 1..L-1, packed slab)
       b_ref : (L, 1, 128)        f32          (all biases, packed slab)
       o_ref : (TILE_B, 128)      f32 (padded output; cols >= out_features are 0)
    """
    n_hidden = wh_ref.shape[0]                       # = num_layers - 1 (static)

    # Layer 0: (TILE_B, in_pad) @ (in_pad, 128) -> small-K matmul.
    y = jnp.dot(x_ref[...], w0_ref[...],
                preferred_element_type=jnp.float32) + b_ref[0]
    h = jnp.maximum(y, 0.0)

    # Layers 1 .. L-1, statically unrolled (ReLU on all but the last).
    for l in range(n_hidden):
        w = wh_ref[l]                                # (128, 128)
        y = jnp.dot(h.astype(w.dtype), w,
                    preferred_element_type=jnp.float32) + b_ref[l + 1]
        h = jnp.maximum(y, 0.0) if l < n_hidden - 1 else y

    o_ref[...] = h.astype(o_ref.dtype)


def model_v2_forward(x, params, *, compute_dtype=jnp.float32, tile_b=512):
    """x: (B, input_features) f32.
       params: list of (W_t, b) with W_t shaped (in_features, out_features)."""
    B, in_features = x.shape
    num_layers = len(params)
    out_features = params[-1][0].shape[1]

    # All feature dims must fit in one lane tile for this kernel.
    assert in_features <= LANE and out_features <= LANE
    for w, _ in params:
        assert w.shape[0] <= LANE and w.shape[1] <= LANE

    in_pad = _round_up(in_features, SUBLANE)

    # ---- Pack params (XLA-side, once per call).
    w0, b0 = params[0]
    w0_pad = jnp.pad(w0.astype(compute_dtype),
                     ((0, in_pad - w0.shape[0]), (0, LANE - w0.shape[1])))
    wh_slab = jnp.stack([
        jnp.pad(w.astype(compute_dtype),
                ((0, LANE - w.shape[0]), (0, LANE - w.shape[1])))
        for (w, _) in params[1:]
    ])                                                      # (L-1, 128, 128)
    b_slab = jnp.stack([
        jnp.pad(b.reshape(1, -1).astype(jnp.float32),
                ((0, 0), (0, LANE - b.size)))
        for (_, b) in params
    ])                                                      # (L, 1, 128)

    # ---- Pad batch + feature dims of the activations (narrow in features).
    tile_b = min(tile_b, _round_up(B, SUBLANE))
    b_pad = _round_up(B, tile_b)
    x_pad = jnp.pad(x.astype(compute_dtype),
                    ((0, b_pad - B), (0, in_pad - in_features)))

    grid = (b_pad // tile_b,)

    out_padded = pl.pallas_call(
        mlp_kernel,
        out_shape=jax.ShapeDtypeStruct((b_pad, LANE), jnp.float32),
        grid=grid,
        in_specs=[
            # activations: tiled along batch, native (narrow) feature width
            pl.BlockSpec((tile_b, in_pad), lambda i: (i, 0)),
            # layer-0 weight: full-array block, VMEM-resident across grid
            pl.BlockSpec((in_pad, LANE), lambda i: (0, 0)),
            # packed hidden/output weights: full-array block, VMEM-resident
            pl.BlockSpec((num_layers - 1, LANE, LANE), lambda i: (0, 0, 0)),
            # packed biases: full-array block, VMEM-resident
            pl.BlockSpec((num_layers, 1, LANE), lambda i: (0, 0, 0)),
        ],
        out_specs=pl.BlockSpec((tile_b, LANE), lambda i: (i, 0)),
        compiler_params=pltpu.CompilerParams(
            dimension_semantics=("parallel",)),  # v7x: shard batch over 2 TCs
    )(x_pad, w0_pad, wh_slab, b_slab)

    return out_padded[:B, :out_features]


def init_params(key, input_features, output_features, hidden_units=24):
    """Deterministic init mimicking nn.Linear (uniform +/- 1/sqrt(fan_in)).
    Weights stored already transposed to (in_features, out_features)."""
    dims = [(input_features, hidden_units),
            (hidden_units, hidden_units),
            (hidden_units, hidden_units),
            (hidden_units, hidden_units),
            (hidden_units, output_features)]
    params = []
    for (fan_in, fan_out) in dims:
        key, kw, kb = jax.random.split(key, 3)
        bound = 1.0 / jnp.sqrt(jnp.float32(fan_in))
        w = jax.random.uniform(kw, (fan_in, fan_out), jnp.float32, -bound, bound)
        b = jax.random.uniform(kb, (1, fan_out), jnp.float32, -bound, bound)
        params.append((w, b))
    return params


def reference_forward(x, params):
    h = x
    for i, (w, b) in enumerate(params):
        h = h @ w + b
        if i < len(params) - 1:
            h = jnp.maximum(h, 0.0)
    return h


if __name__ == "__main__":
    key = jax.random.PRNGKey(0)
    k_x, k_p = jax.random.split(key)

    batch = 8
    input_features = 8
    output_features = 3
    hidden_units = 24

    x = jax.random.normal(k_x, (batch, input_features), jnp.float32)
    params = init_params(k_p, input_features, output_features, hidden_units)

    ref = reference_forward(x, params)

    # f32 compute path: must match the reference tightly.
    out_f32 = jax.block_until_ready(
        model_v2_forward(x, params, compute_dtype=jnp.float32))
    assert out_f32.shape == (batch, output_features), out_f32.shape
    assert jnp.allclose(out_f32, ref, atol=1e-5, rtol=1e-5), "f32 mismatch vs reference"

    # bf16 compute path (v6e/v7x MXU-friendly): f32 accumulation, loose tolerance.
    out_bf16 = jax.block_until_ready(
        model_v2_forward(x, params, compute_dtype=jnp.bfloat16))
    assert out_bf16.shape == (batch, output_features), out_bf16.shape
    assert jnp.allclose(out_bf16, ref, atol=1e-1, rtol=1e-1), "bf16 mismatch vs reference"

    print("KERNEL_OK")
</pallas_src>

<mosaic_0001>
module attributes {stable_mosaic.version = 11 : i64} {
  func.func @mlp_kernel(%arg0: i32, %arg1: memref<8x8xf32, #tpu.memory_space<vmem>>, %arg2: memref<8x128xf32, #tpu.memory_space<vmem>>, %arg3: memref<4x128x128xf32, #tpu.memory_space<vmem>>, %arg4: memref<5x1x128xf32, #tpu.memory_space<vmem>>, %arg5: memref<8x128xf32, #tpu.memory_space<vmem>>) attributes {dimension_semantics = [#tpu.dimension_semantics<parallel>], iteration_bounds = array<i64: 1>, scalar_prefetch = 0 : i64, scratch_operands = 0 : i64, tpu.core_type = #tpu.core_type<tc>, window_params = [{transform_indices = @transform_0, window_bounds = array<i64: 8, 8>}, {pipeline_mode = #tpu.pipeline_mode<synchronous>, transform_indices = @transform_1, window_bounds = array<i64: 8, 128>}, {pipeline_mode = #tpu.pipeline_mode<synchronous>, transform_indices = @transform_2, window_bounds = array<i64: 4, 128, 128>}, {pipeline_mode = #tpu.pipeline_mode<synchronous>, transform_indices = @transform_3, window_bounds = array<i64: 5, 1, 128>}, {transform_indices = @transform_4, window_bounds = array<i64: 8, 128>}]} {
    %c0 = arith.constant 0 : index
    %c0_0 = arith.constant 0 : index
    %0 = vector.load %arg1[%c0, %c0_0] : memref<8x8xf32, #tpu.memory_space<vmem>>, vector<8x8xf32>
    %c0_1 = arith.constant 0 : index
    %c0_2 = arith.constant 0 : index
    %1 = vector.load %arg2[%c0_1, %c0_2] : memref<8x128xf32, #tpu.memory_space<vmem>>, vector<8x128xf32>
    %cst = arith.constant dense<0.000000e+00> : vector<8x128xf32>
    %2 = tpu.matmul %0, %1, %cst {dimension_numbers = #tpu.dot_dimension_numbers<[1], [0], [0], [1], [0, 0, 1, 1], [], []>} : vector<8x8xf32>, vector<8x128xf32>, vector<8x128xf32> -> vector<8x128xf32>
    %c0_3 = arith.constant 0 : index
    %c0_4 = arith.constant 0 : index
    %c0_5 = arith.constant 0 : index
    %3 = vector.load %arg4[%c0_3, %c0_4, %c0_5] : memref<5x1x128xf32, #tpu.memory_space<vmem>>, vector<1x1x128xf32>
    %4 = vector.shape_cast %3 : vector<1x1x128xf32> to vector<1x128xf32>
    %5 = vector.broadcast %4 : vector<1x128xf32> to vector<8x128xf32>
    %6 = arith.addf %2, %5 : vector<8x128xf32>
    %cst_6 = arith.constant 0.000000e+00 : f32
    %7 = vector.broadcast %cst_6 : f32 to vector<8x128xf32>
    %8 = arith.maximumf %6, %7 : vector<8x128xf32>
    %c0_7 = arith.constant 0 : index
    %c0_8 = arith.constant 0 : index
    %c0_9 = arith.constant 0 : index
    %9 = vector.load %arg3[%c0_7, %c0_8, %c0_9] : memref<4x128x128xf32, #tpu.memory_space<vmem>>, vector<1x128x128xf32>
    %10 = vector.shape_cast %9 : vector<1x128x128xf32> to vector<128x128xf32>
    %cst_10 = arith.constant dense<0.000000e+00> : vector<8x128xf32>
    %11 = tpu.matmul %8, %10, %cst_10 {dimension_numbers = #tpu.dot_dimension_numbers<[1], [0], [0], [1], [0, 0, 1, 1], [], []>} : vector<8x128xf32>, vector<128x128xf32>, vector<8x128xf32> -> vector<8x128xf32>
    %c1 = arith.constant 1 : index
    %c0_11 = arith.constant 0 : index
    %c0_12 = arith.constant 0 : index
    %12 = vector.load %arg4[%c1, %c0_11, %c0_12] : memref<5x1x128xf32, #tpu.memory_space<vmem>>, vector<1x1x128xf32>
    %13 = vector.shape_cast %12 : vector<1x1x128xf32> to vector<1x128xf32>
    %14 = vector.broadcast %13 : vector<1x128xf32> to vector<8x128xf32>
    %15 = arith.addf %11, %14 : vector<8x128xf32>
    %cst_13 = arith.constant 0.000000e+00 : f32
    %16 = vector.broadcast %cst_13 : f32 to vector<8x128xf32>
    %17 = arith.maximumf %15, %16 : vector<8x128xf32>
    %c1_14 = arith.constant 1 : index
    %c0_15 = arith.constant 0 : index
    %c0_16 = arith.constant 0 : index
    %18 = vector.load %arg3[%c1_14, %c0_15, %c0_16] : memref<4x128x128xf32, #tpu.memory_space<vmem>>, vector<1x128x128xf32>
    %19 = vector.shape_cast %18 : vector<1x128x128xf32> to vector<128x128xf32>
    %cst_17 = arith.constant dense<0.000000e+00> : vector<8x128xf32>
    %20 = tpu.matmul %17, %19, %cst_17 {dimension_numbers = #tpu.dot_dimension_numbers<[1], [0], [0], [1], [0, 0, 1, 1], [], []>} : vector<8x128xf32>, vector<128x128xf32>, vector<8x128xf32> -> vector<8x128xf32>
    %c2 = arith.constant 2 : index
    %c0_18 = arith.constant 0 : index
    %c0_19 = arith.constant 0 : index
    %21 = vector.load %arg4[%c2, %c0_18, %c0_19] : memref<5x1x128xf32, #tpu.memory_space<vmem>>, vector<1x1x128xf32>
    %22 = vector.shape_cast %21 : vector<1x1x128xf32> to vector<1x128xf32>
    %23 = vector.broadcast %22 : vector<1x128xf32> to vector<8x128xf32>
    %24 = arith.addf %20, %23 : vector<8x128xf32>
    %cst_20 = arith.constant 0.000000e+00 : f32
    %25 = vector.broadcast %cst_20 : f32 to vector<8x128xf32>
    %26 = arith.maximumf %24, %25 : vector<8x128xf32>
    %c2_21 = arith.constant 2 : index
    %c0_22 = arith.constant 0 : index
    %c0_23 = arith.constant 0 : index
    %27 = vector.load %arg3[%c2_21, %c0_22, %c0_23] : memref<4x128x128xf32, #tpu.memory_space<vmem>>, vector<1x128x128xf32>
    %28 = vector.shape_cast %27 : vector<1x128x128xf32> to vector<128x128xf32>
    %cst_24 = arith.constant dense<0.000000e+00> : vector<8x128xf32>
    %29 = tpu.matmul %26, %28, %cst_24 {dimension_numbers = #tpu.dot_dimension_numbers<[1], [0], [0], [1], [0, 0, 1, 1], [], []>} : vector<8x128xf32>, vector<128x128xf32>, vector<8x128xf32> -> vector<8x128xf32>
    %c3 = arith.constant 3 : index
    %c0_25 = arith.constant 0 : index
    %c0_26 = arith.constant 0 : index
    %30 = vector.load %arg4[%c3, %c0_25, %c0_26] : memref<5x1x128xf32, #tpu.memory_space<vmem>>, vector<1x1x128xf32>
    %31 = vector.shape_cast %30 : vector<1x1x128xf32> to vector<1x128xf32>
    %32 = vector.broadcast %31 : vector<1x128xf32> to vector<8x128xf32>
    %33 = arith.addf %29, %32 : vector<8x128xf32>
    %cst_27 = arith.constant 0.000000e+00 : f32
    %34 = vector.broadcast %cst_27 : f32 to vector<8x128xf32>
    %35 = arith.maximumf %33, %34 : vector<8x128xf32>
    %c3_28 = arith.constant 3 : index
    %c0_29 = arith.constant 0 : index
    %c0_30 = arith.constant 0 : index
    %36 = vector.load %arg3[%c3_28, %c0_29, %c0_30] : memref<4x128x128xf32, #tpu.memory_space<vmem>>, vector<1x128x128xf32>
    %37 = vector.shape_cast %36 : vector<1x128x128xf32> to vector<128x128xf32>
    %cst_31 = arith.constant dense<0.000000e+00> : vector<8x128xf32>
    %38 = tpu.matmul %35, %37, %cst_31 {dimension_numbers = #tpu.dot_dimension_numbers<[1], [0], [0], [1], [0, 0, 1, 1], [], []>} : vector<8x128xf32>, vector<128x128xf32>, vector<8x128xf32> -> vector<8x128xf32>
    %c4 = arith.constant 4 : index
    %c0_32 = arith.constant 0 : index
    %c0_33 = arith.constant 0 : index
    %39 = vector.load %arg4[%c4, %c0_32, %c0_33] : memref<5x1x128xf32, #tpu.memory_space<vmem>>, vector<1x1x128xf32>
    %40 = vector.shape_cast %39 : vector<1x1x128xf32> to vector<1x128xf32>
    %41 = vector.broadcast %40 : vector<1x128xf32> to vector<8x128xf32>
    %42 = arith.addf %38, %41 : vector<8x128xf32>
    %c0_34 = arith.constant 0 : index
    %c0_35 = arith.constant 0 : index
    %43 = vector.load %arg5[%c0_34, %c0_35] : memref<8x128xf32, #tpu.memory_space<vmem>>, vector<8x128xf32>
    tpu.vector_store %arg5[%c0_34, %c0_35], %42 {strides = array<i32>} : memref<8x128xf32, #tpu.memory_space<vmem>>, vector<8x128xf32>,
    return
  }
  func.func @transform_0(%arg0: i32) -> (i32, i32) {
    %c0_i32 = arith.constant 0 : i32
    %c0_i32_0 = arith.constant 0 : i32
    return %arg0, %c0_i32 : i32, i32
  }
  func.func @transform_1(%arg0: i32) -> (i32, i32) {
    %c0_i32 = arith.constant 0 : i32
    %c0_i32_0 = arith.constant 0 : i32
    %c0_i32_1 = arith.constant 0 : i32
    return %c0_i32, %c0_i32_0 : i32, i32
  }
  func.func @transform_2(%arg0: i32) -> (i32, i32, i32) {
    %c0_i32 = arith.constant 0 : i32
    %c0_i32_0 = arith.constant 0 : i32
    %c0_i32_1 = arith.constant 0 : i32
    %c0_i32_2 = arith.constant 0 : i32
    return %c0_i32, %c0_i32_0, %c0_i32_1 : i32, i32, i32
  }
  func.func @transform_3(%arg0: i32) -> (i32, i32, i32) {
    %c0_i32 = arith.constant 0 : i32
    %c0_i32_0 = arith.constant 0 : i32
    %c0_i32_1 = arith.constant 0 : i32
    %c0_i32_2 = arith.constant 0 : i32
    return %c0_i32, %c0_i32_0, %c0_i32_1 : i32, i32, i32
  }
  func.func @transform_4(%arg0: i32) -> (i32, i32) {
    %c0_i32 = arith.constant 0 : i32
    %c0_i32_0 = arith.constant 0 : i32
    return %arg0, %c0_i32 : i32, i32
  }
}

</mosaic_0001>

<llo_original>
// kernel: tpu_custom_call.1
$region0: #{tpu_custom_call.1}
  #allocation0 [shape = 'u32[]', space=smem, size = 0x4, offset = 0x4, fixed_abs, tag = 'smem constant byte address 0x4 - core index']
  #allocation1 [shape = 'u32[144,128]{1,0:T(1,128)}', space=vmem, size = 0x12000, scoped, tag = 'internal scratch']
  %s0 = inlined_call_operand.hbm [shape: f32[8,8], index: 0, kind: input, shape index: {}]
  %s1 = inlined_call_operand.hbm [shape: f32[8,128], index: 1, kind: input, shape index: {}]
  %s2 = inlined_call_operand.hbm [shape: f32[4,128,128], index: 2, kind: input, shape index: {}]
  %s3 = inlined_call_operand.vmem [shape: f32[5,1,128], index: 3, kind: input, shape index: {}]
  %s4 = inlined_call_operand.hbm [shape: f32[8,128], index: 4, kind: output, shape index: {}]
  %s5 = sld [smem:[#allocation0]]
  $region38: #{tpu_custom_call.1} parent=0
    _
  %s7 = ssub.s32 1, %s5
  %s8 = scalar_select 0, %s7, %s5
  $region1: #{tpu_custom_call.1} parent=0
    #allocation2 [shape = 'u8[4096]{0}', space=vmem, size = 0x1000, scoped, tag = 'input window, operand 0, single buffered']
    #allocation3 [shape = 's32[1]{0}', space=sflag, size = 0x4, scoped, tag = 'scoped memory for tpu_custom_call.1']
    #allocation4 [shape = 's32[1]{0}', space=sflag, size = 0x4, scoped, tag = 'scoped memory for tpu_custom_call.1']
    #allocation5 [shape = 'u8[4096]{0}', space=vmem, size = 0x1000, scoped, tag = 'input window, operand 1, single buffered']
    #allocation6 [shape = 's32[1]{0}', space=sflag, size = 0x4, scoped, tag = 'scoped memory for tpu_custom_call.1']
    #allocation7 [shape = 'u8[262144]{0}', space=vmem, size = 0x40000, scoped, tag = 'input window, operand 2, single buffered']
    #allocation8 [shape = 'u8[4096]{0}', space=vmem, size = 0x1000, scoped, tag = 'output window, operand 0, single buffered']
    %9 = vsyncpa [#allocation3], 0
    %10 = vsyncpa [#allocation6], 0
    %11 = vsyncpa [#allocation4], 0
    // Predicated region
    $region2: #{tpu_custom_call.1} parent=1 // pred_check
      _
    $region3: #{tpu_custom_call.1} parent=1 // pred_check_branch
      %13 = sbr.rel (0) target = $region5
    $region4: #{tpu_custom_call.1} parent=1 // pred_region
      %s15 = ssub.s32 128, 128
      %16 = vsyncadd [#allocation3], %s15
      %s18 = sshll.u32 [#allocation2], 4
      %s19 = int_to_ptr.vmem [resolvable:$true] %s18
      %21 = dma.hbm_to_vmem [thread:$0]  %s0, 128, %s19, [#allocation3]
    $region5: #{tpu_custom_call.1} parent=1 // pred_fallthru
      _
    // Predicated region
    $region6: #{tpu_custom_call.1} parent=1 // pred_check
      _
    $region7: #{tpu_custom_call.1} parent=1 // pred_check_branch
      %23 = sbr.rel (0) target = $region9
    $region8: #{tpu_custom_call.1} parent=1 // pred_region
      %s25 = ssub.s32 128, 128
      %26 = vsyncadd [#allocation6], %s25
      %s28 = sshll.u32 [#allocation5], 4
      %s29 = int_to_ptr.vmem [resolvable:$true] %s28
      %31 = dma.hbm_to_vmem [thread:$0]  %s1, 128, %s29, [#allocation6]
    $region9: #{tpu_custom_call.1} parent=1 // pred_fallthru
      _
    // Predicated region
    $region10: #{tpu_custom_call.1} parent=1 // pred_check
      _
    $region11: #{tpu_custom_call.1} parent=1 // pred_check_branch
      %33 = sbr.rel (0) target = $region13
    $region12: #{tpu_custom_call.1} parent=1 // pred_region
      %s35 = ssub.s32 8192, 8192
      %36 = vsyncadd [#allocation6], %s35
      %s37 = sshll.u32 [#allocation7], 4
      %s38 = int_to_ptr.vmem [resolvable:$true] %s37
      %43 = dma.hbm_to_vmem [thread:$0]  %s2, 8192, %s38, [#allocation6], 128, 128, 8
    $region13: #{tpu_custom_call.1} parent=1 // pred_fallthru
      _
    // Predicated region
    $region14: #{tpu_custom_call.1} parent=1 // pred_check
      _
    $region15: #{tpu_custom_call.1} parent=1 // pred_check_branch
      %45 = sbr.rel (0) target = $region17
    $region16: #{tpu_custom_call.1} parent=1 // pred_region
      _
    $region17: #{tpu_custom_call.1} parent=1 // pred_fallthru
      _
    // Predicated region
    $region18: #{tpu_custom_call.1} parent=1 // pred_check
      _
    $region19: #{tpu_custom_call.1} parent=1 // pred_check_branch
      %47 = sbr.rel (0) target = $region21
    $region20: #{tpu_custom_call.1} parent=1 // pred_region
      %48 = dma.done [#allocation3], 128
    $region21: #{tpu_custom_call.1} parent=1 // pred_fallthru
      _
    // Predicated region
    $region22: #{tpu_custom_call.1} parent=1 // pred_check
      _
    $region23: #{tpu_custom_call.1} parent=1 // pred_check_branch
      %50 = sbr.rel (0) target = $region25
    $region24: #{tpu_custom_call.1} parent=1 // pred_region
      %51 = dma.done [#allocation6], 128
    $region25: #{tpu_custom_call.1} parent=1 // pred_fallthru
      _
    // Predicated region
    $region26: #{tpu_custom_call.1} parent=1 // pred_check
      _
    $region27: #{tpu_custom_call.1} parent=1 // pred_check_branch
      %53 = sbr.rel (0) target = $region29
    $region28: #{tpu_custom_call.1} parent=1 // pred_region
      %54 = dma.done [#allocation6], 8192
    $region29: #{tpu_custom_call.1} parent=1 // pred_fallthru
      _
    %v55 = vld [vmem:[#allocation2] sm:$0xff]
    %v56 = vld [vmem:[#allocation5] sm:$0xff]
    %v57 = vld [vmem:[%s3] sm:$0x1]
    %v59 = vlaneseq
    %v60 = vshrl.u32 %v59, 7
    %v61 = vsub.s32 0, %v60
    %v62 = vrot.slane %v57, %v61
    %vm64 = vcmask 64512
    %v66 = vsel %vm64, %v55, 0
    %68 = vmatprep.subr.mxu0 0.0
    %69 = vmatpush1.msra.mxu0 %v56
    %70 = vmatprep.subr.mxu0 0.0
    %71 = vmatpush1.msra.mxu0 0.0
    %72 = vmatprep.subr.mxu0 0.0
    %73 = vmatpush1.msra.mxu0 0.0
    %74 = vmatprep.subr.mxu0 0.0
    %75 = vmatpush1.msra.mxu0 0.0
    %76 = vmatprep.subr.mxu0 0.0
    %77 = vmatpush1.msra.mxu0 0.0
    %78 = vmatprep.subr.mxu0 0.0
    %79 = vmatpush1.msra.mxu0 0.0
    %80 = vmatprep.subr.mxu0 0.0
    %81 = vmatpush1.msra.mxu0 0.0
    %82 = vmatprep.subr.mxu0 0.0
    %83 = vmatpush1.msra.mxu0 0.0
    %84 = vmatprep.subr.mxu0 0.0
    %85 = vmatpush1.msra.mxu0 0.0
    %86 = vmatprep.subr.mxu0 0.0
    %87 = vmatpush1.msra.mxu0 0.0
    %88 = vmatprep.subr.mxu0 0.0
    %89 = vmatpush1.msra.mxu0 0.0
    %90 = vmatprep.subr.mxu0 0.0
    %91 = vmatpush1.msra.mxu0 0.0
    %92 = vmatprep.subr.mxu0 0.0
    %93 = vmatpush1.msra.mxu0 0.0
    %94 = vmatprep.subr.mxu0 0.0
    %95 = vmatpush1.msra.mxu0 0.0
    %96 = vmatprep.subr.mxu0 0.0
    %97 = vmatpush1.msra.mxu0 0.0
    %98 = vmatprep.subr.mxu0 0.0
    %99 = vmatpush1.msra.mxu0 0.0
    %100 = vmatprep.subr.mxu0 0.0
    %101 = vmatpush1.msra.mxu0 0.0
    %102 = vmatprep.subr.mxu0 0.0
    %103 = vmatpush1.msra.mxu0 0.0
    %104 = vmatprep.subr.mxu0 0.0
    %105 = vmatpush1.msra.mxu0 0.0
    %106 = vmatprep.subr.mxu0 0.0
    %107 = vmatpush1.msra.mxu0 0.0
    %108 = vmatprep.subr.mxu0 0.0
    %109 = vmatpush1.msra.mxu0 0.0
    %110 = vmatprep.subr.mxu0 0.0
    %111 = vmatpush1.msra.mxu0 0.0
    %112 = vmatprep.subr.mxu0 0.0
    %113 = vmatpush1.msra.mxu0 0.0
    %114 = vmatprep.subr.mxu0 0.0
    %115 = vmatpush1.msra.mxu0 0.0
    %116 = vmatprep.subr.mxu0 0.0
    %117 = vmatpush1.msra.mxu0 0.0
    %118 = vmatprep.subr.mxu0 0.0
    %119 = vmatpush1.msra.mxu0 0.0
    %120 = vmatprep.subr.mxu0 0.0
    %121 = vmatpush1.msra.mxu0 0.0
    %122 = vmatprep.subr.mxu0 0.0
    %123 = vmatpush1.msra.mxu0 0.0
    %124 = vmatprep.subr.mxu0 0.0
    %125 = vmatpush1.msra.mxu0 0.0
    %126 = vmatprep.subr.mxu0 0.0
    %127 = vmatpush1.msra.mxu0 0.0
    %128 = vmatprep.subr.mxu0 0.0
    %129 = vmatpush1.msra.mxu0 0.0
    %130 = vmatprep.subr.mxu0 0.0
    %131 = vmatpush1.msra.mxu0 0.0
    %132 = vmatprep.mubr.f32.mxu0 0.0
    %133 = vmatmul.mubr.f32.gmra.mrb[0].mxu0 %v66
    %v134 = vpop.f32.mrb[0].mxu0
    %v135 = vadd.f32 %v62, %v134
    %v136 = vpop.f32.mrb[0].mxu0
    %137 = vdwg.mxu0
    %v138 = vmax.f32 %v135, 0.0
    %v139 = vld [vmem:[#allocation7] sm:$0xff]
    %v140 = vld [vmem:[#allocation7 + $0x8] sm:$0xff]
    %v141 = vld [vmem:[#allocation7 + $0x10] sm:$0xff]
    %v142 = vld [vmem:[#allocation7 + $0x18] sm:$0xff]
    %v143 = vld [vmem:[#allocation7 + $0x20] sm:$0xff]
    %v144 = vld [vmem:[#allocation7 + $0x28] sm:$0xff]
    %v145 = vld [vmem:[#allocation7 + $0x30] sm:$0xff]
    %v146 = vld [vmem:[#allocation7 + $0x38] sm:$0xff]
    %v147 = vld [vmem:[#allocation7 + $0x40] sm:$0xff]
    %v148 = vld [vmem:[#allocation7 + $0x48] sm:$0xff]
    %v149 = vld [vmem:[#allocation7 + $0x50] sm:$0xff]
    %v150 = vld [vmem:[#allocation7 + $0x58] sm:$0xff]
    %v151 = vld [vmem:[#allocation7 + $0x60] sm:$0xff]
    %v152 = vld [vmem:[#allocation7 + $0x68] sm:$0xff]
    %v153 = vld [vmem:[#allocation7 + $0x70] sm:$0xff]
    %v154 = vld [vmem:[#allocation7 + $0x78] sm:$0xff]
    %s155 = scalar_lea.vmem %s3, 1
    %v156 = vld [vmem:[%s155] sm:$0x1]
    %v158 = vlaneseq
    %v159 = vshrl.u32 %v158, 7
    %v160 = vsub.s32 0, %v159
    %v161 = vrot.slane %v156, %v160
    %163 = vmatprep.subr.mxu0 0.0
    %164 = vmatpush1.msra.mxu0 %v139
    %165 = vmatprep.subr.mxu0 0.0
    %166 = vmatpush1.msra.mxu0 %v140
    %167 = vmatprep.subr.mxu0 0.0
    %168 = vmatpush1.msra.mxu0 %v141
    %169 = vmatprep.subr.mxu0 0.0
    %170 = vmatpush1.msra.mxu0 %v142
    %171 = vmatprep.subr.mxu0 0.0
    %172 = vmatpush1.msra.mxu0 %v143
    %173 = vmatprep.subr.mxu0 0.0
    %174 = vmatpush1.msra.mxu0 %v144
    %175 = vmatprep.subr.mxu0 0.0
    %176 = vmatpush1.msra.mxu0 %v145
    %177 = vmatprep.subr.mxu0 0.0
    %178 = vmatpush1.msra.mxu0 %v146
    %179 = vmatprep.subr.mxu0 0.0
    %180 = vmatpush1.msra.mxu0 %v147
    %181 = vmatprep.subr.mxu0 0.0
    %182 = vmatpush1.msra.mxu0 %v148
    %183 = vmatprep.subr.mxu0 0.0
    %184 = vmatpush1.msra.mxu0 %v149
    %185 = vmatprep.subr.mxu0 0.0
    %186 = vmatpush1.msra.mxu0 %v150
    %187 = vmatprep.subr.mxu0 0.0
    %188 = vmatpush1.msra.mxu0 %v151
    %189 = vmatprep.subr.mxu0 0.0
    %190 = vmatpush1.msra.mxu0 %v152
    %191 = vmatprep.subr.mxu0 0.0
    %192 = vmatpush1.msra.mxu0 %v153
    %193 = vmatprep.subr.mxu0 0.0
    %194 = vmatpush1.msra.mxu0 %v154
    %195 = vmatprep.subr.mxu0 0.0
    %196 = vmatpush1.msra.mxu0 0.0
    %197 = vmatprep.subr.mxu0 0.0
    %198 = vmatpush1.msra.mxu0 0.0
    %199 = vmatprep.subr.mxu0 0.0
    %200 = vmatpush1.msra.mxu0 0.0
    %201 = vmatprep.subr.mxu0 0.0
    %202 = vmatpush1.msra.mxu0 0.0
    %203 = vmatprep.subr.mxu0 0.0
    %204 = vmatpush1.msra.mxu0 0.0
    %205 = vmatprep.subr.mxu0 0.0
    %206 = vmatpush1.msra.mxu0 0.0
    %207 = vmatprep.subr.mxu0 0.0
    %208 = vmatpush1.msra.mxu0 0.0
    %209 = vmatprep.subr.mxu0 0.0
    %210 = vmatpush1.msra.mxu0 0.0
    %211 = vmatprep.subr.mxu0 0.0
    %212 = vmatpush1.msra.mxu0 0.0
    %213 = vmatprep.subr.mxu0 0.0
    %214 = vmatpush1.msra.mxu0 0.0
    %215 = vmatprep.subr.mxu0 0.0
    %216 = vmatpush1.msra.mxu0 0.0
    %217 = vmatprep.subr.mxu0 0.0
    %218 = vmatpush1.msra.mxu0 0.0
    %219 = vmatprep.subr.mxu0 0.0
    %220 = vmatpush1.msra.mxu0 0.0
    %221 = vmatprep.subr.mxu0 0.0
    %222 = vmatpush1.msra.mxu0 0.0
    %223 = vmatprep.subr.mxu0 0.0
    %224 = vmatpush1.msra.mxu0 0.0
    %225 = vmatprep.subr.mxu0 0.0
    %226 = vmatpush1.msra.mxu0 0.0
    %227 = vmatprep.mubr.f32.mxu0 0.0
    %228 = vmatmul.mubr.f32.gmra.mrb[0].mxu0 %v138
    %v229 = vpop.f32.mrb[0].mxu0
    %v230 = vadd.f32 %v161, %v229
    %v231 = vpop.f32.mrb[0].mxu0
    %232 = vdwg.mxu0
    %v233 = vmax.f32 %v230, 0.0
    %s234 = scalar_lea.vmem [#allocation7], 128
    %v235 = vld [vmem:[%s234] sm:$0xff]
    %v236 = vld [vmem:[%s234 + $0x8] sm:$0xff]
    %v237 = vld [vmem:[%s234 + $0x10] sm:$0xff]
    %v238 = vld [vmem:[%s234 + $0x18] sm:$0xff]
    %v239 = vld [vmem:[%s234 + $0x20] sm:$0xff]
    %v240 = vld [vmem:[%s234 + $0x28] sm:$0xff]
    %v241 = vld [vmem:[%s234 + $0x30] sm:$0xff]
    %v242 = vld [vmem:[%s234 + $0x38] sm:$0xff]
    %v243 = vld [vmem:[%s234 + $0x40] sm:$0xff]
    %v244 = vld [vmem:[%s234 + $0x48] sm:$0xff]
    %v245 = vld [vmem:[%s234 + $0x50] sm:$0xff]
    %v246 = vld [vmem:[%s234 + $0x58] sm:$0xff]
    %v247 = vld [vmem:[%s234 + $0x60] sm:$0xff]
    %v248 = vld [vmem:[%s234 + $0x68] sm:$0xff]
    %v249 = vld [vmem:[%s234 + $0x70] sm:$0xff]
    %v250 = vld [vmem:[%s234 + $0x78] sm:$0xff]
    %s251 = scalar_lea.vmem %s3, 2
    %v252 = vld [vmem:[%s251] sm:$0x1]
    %v254 = vlaneseq
    %v255 = vshrl.u32 %v254, 7
    %v256 = vsub.s32 0, %v255
    %v257 = vrot.slane %v252, %v256
    %259 = vmatprep.subr.mxu0 0.0
    %260 = vmatpush1.msra.mxu0 %v235
    %261 = vmatprep.subr.mxu0 0.0
    %262 = vmatpush1.msra.mxu0 %v236
    %263 = vmatprep.subr.mxu0 0.0
    %264 = vmatpush1.msra.mxu0 %v237
    %265 = vmatprep.subr.mxu0 0.0
    %266 = vmatpush1.msra.mxu0 %v238
    %267 = vmatprep.subr.mxu0 0.0
    %268 = vmatpush1.msra.mxu0 %v239
    %269 = vmatprep.subr.mxu0 0.0
    %270 = vmatpush1.msra.mxu0 %v240
    %271 = vmatprep.subr.mxu0 0.0
    %272 = vmatpush1.msra.mxu0 %v241
    %273 = vmatprep.subr.mxu0 0.0
    %274 = vmatpush1.msra.mxu0 %v242
    %275 = vmatprep.subr.mxu0 0.0
    %276 = vmatpush1.msra.mxu0 %v243
    %277 = vmatprep.subr.mxu0 0.0
    %278 = vmatpush1.msra.mxu0 %v244
    %279 = vmatprep.subr.mxu0 0.0
    %280 = vmatpush1.msra.mxu0 %v245
    %281 = vmatprep.subr.mxu0 0.0
    %282 = vmatpush1.msra.mxu0 %v246
    %283 = vmatprep.subr.mxu0 0.0
    %284 = vmatpush1.msra.mxu0 %v247
    %285 = vmatprep.subr.mxu0 0.0
    %286 = vmatpush1.msra.mxu0 %v248
    %287 = vmatprep.subr.mxu0 0.0
    %288 = vmatpush1.msra.mxu0 %v249
    %289 = vmatprep.subr.mxu0 0.0
    %290 = vmatpush1.msra.mxu0 %v250
    %291 = vmatprep.subr.mxu0 0.0
    %292 = vmatpush1.msra.mxu0 0.0
    %293 = vmatprep.subr.mxu0 0.0
    %294 = vmatpush1.msra.mxu0 0.0
    %295 = vmatprep.subr.mxu0 0.0
    %296 = vmatpush1.msra.mxu0 0.0
    %297 = vmatprep.subr.mxu0 0.0
    %298 = vmatpush1.msra.mxu0 0.0
    %299 = vmatprep.subr.mxu0 0.0
    %300 = vmatpush1.msra.mxu0 0.0
    %301 = vmatprep.subr.mxu0 0.0
    %302 = vmatpush1.msra.mxu0 0.0
    %303 = vmatprep.subr.mxu0 0.0
    %304 = vmatpush1.msra.mxu0 0.0
    %305 = vmatprep.subr.mxu0 0.0
    %306 = vmatpush1.msra.mxu0 0.0
    %307 = vmatprep.subr.mxu0 0.0
    %308 = vmatpush1.msra.mxu0 0.0
    %309 = vmatprep.subr.mxu0 0.0
    %310 = vmatpush1.msra.mxu0 0.0
    %311 = vmatprep.subr.mxu0 0.0
    %312 = vmatpush1.msra.mxu0 0.0
    %313 = vmatprep.subr.mxu0 0.0
    %314 = vmatpush1.msra.mxu0 0.0
    %315 = vmatprep.subr.mxu0 0.0
    %316 = vmatpush1.msra.mxu0 0.0
    %317 = vmatprep.subr.mxu0 0.0
    %318 = vmatpush1.msra.mxu0 0.0
    %319 = vmatprep.subr.mxu0 0.0
    %320 = vmatpush1.msra.mxu0 0.0
    %321 = vmatprep.subr.mxu0 0.0
    %322 = vmatpush1.msra.mxu0 0.0
    %323 = vmatprep.mubr.f32.mxu0 0.0
    %324 = vmatmul.mubr.f32.gmra.mrb[0].mxu0 %v233
    %v325 = vpop.f32.mrb[0].mxu0
    %v326 = vadd.f32 %v257, %v325
    %v327 = vpop.f32.mrb[0].mxu0
    %328 = vdwg.mxu0
    %v329 = vmax.f32 %v326, 0.0
    %s330 = scalar_lea.vmem [#allocation7], 256
    %v331 = vld [vmem:[%s330] sm:$0xff]
    %v332 = vld [vmem:[%s330 + $0x8] sm:$0xff]
    %v333 = vld [vmem:[%s330 + $0x10] sm:$0xff]
    %v334 = vld [vmem:[%s330 + $0x18] sm:$0xff]
    %v335 = vld [vmem:[%s330 + $0x20] sm:$0xff]
    %v336 = vld [vmem:[%s330 + $0x28] sm:$0xff]
    %v337 = vld [vmem:[%s330 + $0x30] sm:$0xff]
    %v338 = vld [vmem:[%s330 + $0x38] sm:$0xff]
    %v339 = vld [vmem:[%s330 + $0x40] sm:$0xff]
    %v340 = vld [vmem:[%s330 + $0x48] sm:$0xff]
    %v341 = vld [vmem:[%s330 + $0x50] sm:$0xff]
    %v342 = vld [vmem:[%s330 + $0x58] sm:$0xff]
    %v343 = vld [vmem:[%s330 + $0x60] sm:$0xff]
    %v344 = vld [vmem:[%s330 + $0x68] sm:$0xff]
    %v345 = vld [vmem:[%s330 + $0x70] sm:$0xff]
    %v346 = vld [vmem:[%s330 + $0x78] sm:$0xff]
    %s347 = scalar_lea.vmem %s3, 3
    %v348 = vld [vmem:[%s347] sm:$0x1]
    %v350 = vlaneseq
    %v351 = vshrl.u32 %v350, 7
    %v352 = vsub.s32 0, %v351
    %v353 = vrot.slane %v348, %v352
    %355 = vmatprep.subr.mxu0 0.0
    %356 = vmatpush1.msra.mxu0 %v331
    %357 = vmatprep.subr.mxu0 0.0
    %358 = vmatpush1.msra.mxu0 %v332
    %359 = vmatprep.subr.mxu0 0.0
    %360 = vmatpush1.msra.mxu0 %v333
    %361 = vmatprep.subr.mxu0 0.0
    %362 = vmatpush1.msra.mxu0 %v334
    %363 = vmatprep.subr.mxu0 0.0
    %364 = vmatpush1.msra.mxu0 %v335
    %365 = vmatprep.subr.mxu0 0.0
    %366 = vmatpush1.msra.mxu0 %v336
    %367 = vmatprep.subr.mxu0 0.0
    %368 = vmatpush1.msra.mxu0 %v337
    %369 = vmatprep.subr.mxu0 0.0
    %370 = vmatpush1.msra.mxu0 %v338
    %371 = vmatprep.subr.mxu0 0.0
    %372 = vmatpush1.msra.mxu0 %v339
    %373 = vmatprep.subr.mxu0 0.0
    %374 = vmatpush1.msra.mxu0 %v340
    %375 = vmatprep.subr.mxu0 0.0
    %376 = vmatpush1.msra.mxu0 %v341
    %377 = vmatprep.subr.mxu0 0.0
    %378 = vmatpush1.msra.mxu0 %v342
    %379 = vmatprep.subr.mxu0 0.0
    %380 = vmatpush1.msra.mxu0 %v343
    %381 = vmatprep.subr.mxu0 0.0
    %382 = vmatpush1.msra.mxu0 %v344
    %383 = vmatprep.subr.mxu0 0.0
    %384 = vmatpush1.msra.mxu0 %v345
    %385 = vmatprep.subr.mxu0 0.0
    %386 = vmatpush1.msra.mxu0 %v346
    %387 = vmatprep.subr.mxu0 0.0
    %388 = vmatpush1.msra.mxu0 0.0
    %389 = vmatprep.subr.mxu0 0.0
    %390 = vmatpush1.msra.mxu0 0.0
    %391 = vmatprep.subr.mxu0 0.0
    %392 = vmatpush1.msra.mxu0 0.0
    %393 = vmatprep.subr.mxu0 0.0
    %394 = vmatpush1.msra.mxu0 0.0
    %395 = vmatprep.subr.mxu0 0.0
    %396 = vmatpush1.msra.mxu0 0.0
    %397 = vmatprep.subr.mxu0 0.0
    %398 = vmatpush1.msra.mxu0 0.0
    %399 = vmatprep.subr.mxu0 0.0
    %400 = vmatpush1.msra.mxu0 0.0
    %401 = vmatprep.subr.mxu0 0.0
    %402 = vmatpush1.msra.mxu0 0.0
    %403 = vmatprep.subr.mxu0 0.0
    %404 = vmatpush1.msra.mxu0 0.0
    %405 = vmatprep.subr.mxu0 0.0
    %406 = vmatpush1.msra.mxu0 0.0
    %407 = vmatprep.subr.mxu0 0.0
    %408 = vmatpush1.msra.mxu0 0.0
    %409 = vmatprep.subr.mxu0 0.0
    %410 = vmatpush1.msra.mxu0 0.0
    %411 = vmatprep.subr.mxu0 0.0
    %412 = vmatpush1.msra.mxu0 0.0
    %413 = vmatprep.subr.mxu0 0.0
    %414 = vmatpush1.msra.mxu0 0.0
    %415 = vmatprep.subr.mxu0 0.0
    %416 = vmatpush1.msra.mxu0 0.0
    %417 = vmatprep.subr.mxu0 0.0
    %418 = vmatpush1.msra.mxu0 0.0
    %419 = vmatprep.mubr.f32.mxu0 0.0
    %420 = vmatmul.mubr.f32.gmra.mrb[0].mxu0 %v329
    %v421 = vpop.f32.mrb[0].mxu0
    %v422 = vadd.f32 %v353, %v421
    %v423 = vpop.f32.mrb[0].mxu0
    %424 = vdwg.mxu0
    %v425 = vmax.f32 %v422, 0.0
    %s426 = scalar_lea.vmem [#allocation7], 384
    %v427 = vld [vmem:[%s426] sm:$0xff]
    %v428 = vld [vmem:[%s426 + $0x8] sm:$0xff]
    %v429 = vld [vmem:[%s426 + $0x10] sm:$0xff]
    %v430 = vld [vmem:[%s426 + $0x18] sm:$0xff]
    %v431 = vld [vmem:[%s426 + $0x20] sm:$0xff]
    %v432 = vld [vmem:[%s426 + $0x28] sm:$0xff]
    %v433 = vld [vmem:[%s426 + $0x30] sm:$0xff]
    %v434 = vld [vmem:[%s426 + $0x38] sm:$0xff]
    %v435 = vld [vmem:[%s426 + $0x40] sm:$0xff]
    %v436 = vld [vmem:[%s426 + $0x48] sm:$0xff]
    %v437 = vld [vmem:[%s426 + $0x50] sm:$0xff]
    %v438 = vld [vmem:[%s426 + $0x58] sm:$0xff]
    %v439 = vld [vmem:[%s426 + $0x60] sm:$0xff]
    %v440 = vld [vmem:[%s426 + $0x68] sm:$0xff]
    %v441 = vld [vmem:[%s426 + $0x70] sm:$0xff]
    %v442 = vld [vmem:[%s426 + $0x78] sm:$0xff]
    %s443 = scalar_lea.vmem %s3, 4
    %v444 = vld [vmem:[%s443] sm:$0x1]
    %v446 = vlaneseq
    %v447 = vshrl.u32 %v446, 7
    %v448 = vsub.s32 0, %v447
    %v449 = vrot.slane %v444, %v448
    %451 = vmatprep.subr.mxu0 0.0
    %452 = vmatpush1.msra.mxu0 %v427
    %453 = vmatprep.subr.mxu0 0.0
    %454 = vmatpush1.msra.mxu0 %v428
    %455 = vmatprep.subr.mxu0 0.0
    %456 = vmatpush1.msra.mxu0 %v429
    %457 = vmatprep.subr.mxu0 0.0
    %458 = vmatpush1.msra.mxu0 %v430
    %459 = vmatprep.subr.mxu0 0.0
    %460 = vmatpush1.msra.mxu0 %v431
    %461 = vmatprep.subr.mxu0 0.0
    %462 = vmatpush1.msra.mxu0 %v432
    %463 = vmatprep.subr.mxu0 0.0
    %464 = vmatpush1.msra.mxu0 %v433
    %465 = vmatprep.subr.mxu0 0.0
    %466 = vmatpush1.msra.mxu0 %v434
    %467 = vmatprep.subr.mxu0 0.0
    %468 = vmatpush1.msra.mxu0 %v435
    %469 = vmatprep.subr.mxu0 0.0
    %470 = vmatpush1.msra.mxu0 %v436
    %471 = vmatprep.subr.mxu0 0.0
    %472 = vmatpush1.msra.mxu0 %v437
    %473 = vmatprep.subr.mxu0 0.0
    %474 = vmatpush1.msra.mxu0 %v438
    %475 = vmatprep.subr.mxu0 0.0
    %476 = vmatpush1.msra.mxu0 %v439
    %477 = vmatprep.subr.mxu0 0.0
    %478 = vmatpush1.msra.mxu0 %v440
    %479 = vmatprep.subr.mxu0 0.0
    %480 = vmatpush1.msra.mxu0 %v441
    %481 = vmatprep.subr.mxu0 0.0
    %482 = vmatpush1.msra.mxu0 %v442
    %483 = vmatprep.subr.mxu0 0.0
    %484 = vmatpush1.msra.mxu0 0.0
    %485 = vmatprep.subr.mxu0 0.0
    %486 = vmatpush1.msra.mxu0 0.0
    %487 = vmatprep.subr.mxu0 0.0
    %488 = vmatpush1.msra.mxu0 0.0
    %489 = vmatprep.subr.mxu0 0.0
    %490 = vmatpush1.msra.mxu0 0.0
    %491 = vmatprep.subr.mxu0 0.0
    %492 = vmatpush1.msra.mxu0 0.0
    %493 = vmatprep.subr.mxu0 0.0
    %494 = vmatpush1.msra.mxu0 0.0
    %495 = vmatprep.subr.mxu0 0.0
    %496 = vmatpush1.msra.mxu0 0.0
    %497 = vmatprep.subr.mxu0 0.0
    %498 = vmatpush1.msra.mxu0 0.0
    %499 = vmatprep.subr.mxu0 0.0
    %500 = vmatpush1.msra.mxu0 0.0
    %501 = vmatprep.subr.mxu0 0.0
    %502 = vmatpush1.msra.mxu0 0.0
    %503 = vmatprep.subr.mxu0 0.0
    %504 = vmatpush1.msra.mxu0 0.0
    %505 = vmatprep.subr.mxu0 0.0
    %506 = vmatpush1.msra.mxu0 0.0
    %507 = vmatprep.subr.mxu0 0.0
    %508 = vmatpush1.msra.mxu0 0.0
    %509 = vmatprep.subr.mxu0 0.0
    %510 = vmatpush1.msra.mxu0 0.0
    %511 = vmatprep.subr.mxu0 0.0
    %512 = vmatpush1.msra.mxu0 0.0
    %513 = vmatprep.subr.mxu0 0.0
    %514 = vmatpush1.msra.mxu0 0.0
    %515 = vmatprep.mubr.f32.mxu0 0.0
    %516 = vmatmul.mubr.f32.gmra.mrb[0].mxu0 %v425
    %v517 = vpop.f32.mrb[0].mxu0
    %v518 = vadd.f32 %v449, %v517
    %v519 = vpop.f32.mrb[0].mxu0
    %520 = vdwg.mxu0
    %521 = vst [vmem:[#allocation8] sm:$0xff] %v518
    // Predicated region
    $region30: #{tpu_custom_call.1} parent=1 // pred_check
      _
    $region31: #{tpu_custom_call.1} parent=1 // pred_check_branch
      %523 = sbr.rel (0) target = $region33
    $region32: #{tpu_custom_call.1} parent=1 // pred_region
      %s525 = ssub.s32 128, 128
      %526 = vsyncadd [#allocation4], %s525
      %s528 = sshll.u32 [#allocation8], 4
      %s529 = int_to_ptr.vmem [resolvable:$true] %s528
      %531 = dma.vmem_to_hbm [thread:$0]  %s529, 128, %s4, [#allocation4]
    $region33: #{tpu_custom_call.1} parent=1 // pred_fallthru
      _
    // Predicated region
    $region34: #{tpu_custom_call.1} parent=1 // pred_check
      _
    $region35: #{tpu_custom_call.1} parent=1 // pred_check_branch
      %533 = sbr.rel (0) target = $region37
    $region36: #{tpu_custom_call.1} parent=1 // pred_region
      %534 = dma.done [#allocation4], 128
    $region37: #{tpu_custom_call.1} parent=1 // pred_fallthru
      _
    %535 = vsyncpa [#allocation3], 1
    %536 = vsyncpa [#allocation6], 1
    %537 = vsyncpa [#allocation4], 1

</llo_original>
